<compile_context>
chip_gen: v7x
topology: tpu7x:2x2x1
jax: 0.10.0
libtpu: 0.0.40
codegen_flags: <defaults>
</compile_context>

<pallas_src>
import functools

import jax
import jax.numpy as jnp
from jax.experimental import pallas as pl
from jax.experimental.pallas import tpu as pltpu


def _round_up(x, m):
    return (x + m - 1) // m * m


def _nss_kernel(xT_ref, uT_ref, w1x_ref, w1u_ref, b1_ref, w2_ref, b2_ref,
                out_ref, *, activation):
    """One batch tile, batch on the lane axis.

    xT_ref : (n_x,    tile_b)   streamed
    uT_ref : (n_u,    tile_b)   streamed
    w1x    : (n_feat, n_x)      resident
    w1u    : (n_feat, n_u)      resident
    b1     : (n_feat, 1)        resident
    w2     : (n_x,    n_feat)   resident (scale_dx already folded in)
    b2     : (n_x,    1)        resident (scale_dx already folded in)
    out    : (n_x,    tile_b)   lane-dense store
    """
    # h = act(W1x @ x^T + W1u @ u^T + b1)    -> (n_feat, tile_b), f32 accumulate
    h = jnp.dot(w1x_ref[...], xT_ref[...], preferred_element_type=jnp.float32)
    h = h + jnp.dot(w1u_ref[...], uT_ref[...],
                    preferred_element_type=jnp.float32)
    h = h + b1_ref[...].astype(jnp.float32)
    if activation == "relu":
        h = jnp.maximum(h, 0.0)
    elif activation == "softplus":
        h = jax.nn.softplus(h)
    elif activation == "tanh":
        h = jnp.tanh(h)
    else:
        raise ValueError(f"unknown activation: {activation}")

    # dx^T = (scale*W2) @ h + scale*b2       -> (n_x, tile_b)
    dx = jnp.dot(w2_ref[...], h, preferred_element_type=jnp.float32)
    out_ref[...] = (dx + b2_ref[...].astype(jnp.float32)).astype(out_ref.dtype)


def neural_state_space_forward(in_x, in_u, params, scale_dx, *,
                               activation="relu", tile_b=512):
    """JAX wrapper: layout plumbing + Pallas kernel for the fused MLP.

    params follow the PyTorch nn.Linear layout:
      w1: (n_feat, n_x + n_u), b1: (n_feat,), w2: (n_x, n_feat), b2: (n_x,)
    """
    w1, b1, w2, b2 = params
    B, n_x = in_x.shape
    n_u = in_u.shape[1]
    n_feat = w1.shape[0]
    assert w1.shape == (n_feat, n_x + n_u)
    assert w2.shape == (n_x, n_feat)

    # --- tiny, traceable weight-side prep (keeps scale_dx dynamic) ----------
    w1x = w1[:, :n_x]                              # (n_feat, n_x)
    w1u = w1[:, n_x:]                              # (n_feat, n_u)
    b1c = b1.reshape(n_feat, 1)                    # (n_feat, 1)
    w2s = w2 * scale_dx                            # fold scale into layer 2
    b2s = (b2 * scale_dx).reshape(n_x, 1)          # (n_x, 1)

    # --- batch tiling: batch on the lane axis, tile_b a multiple of 128 -----
    tile = _round_up(min(int(tile_b), _round_up(B, 128)), 128)
    Bp = _round_up(B, tile)
    grid = Bp // tile
    pad = Bp - B

    x_t = jnp.pad(in_x, ((0, pad), (0, 0))).T      # (n_x, Bp)
    u_t = jnp.pad(in_u, ((0, pad), (0, 0))).T      # (n_u, Bp)

    itemsize = jnp.dtype(in_x.dtype).itemsize
    flops = 2 * Bp * n_feat * (n_x + n_u) + 2 * Bp * n_feat * n_x
    bytes_accessed = (
        (x_t.size + u_t.size + Bp * n_x) * itemsize
        + (w1.size + b1.size + w2.size + b2.size) * jnp.dtype(w1.dtype).itemsize
    )

    kernel = functools.partial(_nss_kernel, activation=activation)

    out_t = pl.pallas_call(
        kernel,
        out_shape=jax.ShapeDtypeStruct((n_x, Bp), in_x.dtype),
        grid_spec=pltpu.PrefetchScalarGridSpec(
            num_scalar_prefetch=0,
            grid=(grid,),
            in_specs=[
                pl.BlockSpec((n_x, tile), lambda i: (0, i)),     # x^T (stream)
                pl.BlockSpec((n_u, tile), lambda i: (0, i)),     # u^T (stream)
                pl.BlockSpec((n_feat, n_x), lambda i: (0, 0)),   # W1x (resident)
                pl.BlockSpec((n_feat, n_u), lambda i: (0, 0)),   # W1u (resident)
                pl.BlockSpec((n_feat, 1), lambda i: (0, 0)),     # b1
                pl.BlockSpec((n_x, n_feat), lambda i: (0, 0)),   # scale*W2
                pl.BlockSpec((n_x, 1), lambda i: (0, 0)),        # scale*b2
            ],
            out_specs=pl.BlockSpec((n_x, tile), lambda i: (0, i)),
        ),
        compiler_params=pltpu.CompilerParams(
            dimension_semantics=("parallel",)),
        cost_estimate=pl.CostEstimate(
            flops=flops, transcendentals=0, bytes_accessed=bytes_accessed),
    )(x_t, u_t, w1x, w1u, b1c, w2s, b2s)

    # back to the module's (B, n_x) batch-major convention
    return out_t.T[:B]


def init_params(key, n_x, n_u, n_feat, init_small=True, dtype=jnp.float32):
    """Parameter init matching the PyTorch module (nn.Linear layout)."""
    k1, k2 = jax.random.split(key)
    n_in = n_x + n_u
    std1 = 1e-4 if init_small else 1.0 / float(jnp.sqrt(n_in))
    std2 = 1e-4 if init_small else 1.0 / float(jnp.sqrt(n_feat))
    w1 = (std1 * jax.random.normal(k1, (n_feat, n_in))).astype(dtype)
    b1 = jnp.zeros((n_feat,), dtype)
    w2 = (std2 * jax.random.normal(k2, (n_x, n_feat))).astype(dtype)
    b2 = jnp.zeros((n_x,), dtype)
    return w1, b1, w2, b2


def _reference(in_x, in_u, params, scale_dx, activation="relu"):
    w1, b1, w2, b2 = params
    xu = jnp.concatenate([in_x, in_u], axis=-1)
    pre = xu @ w1.T + b1
    if activation == "relu":
        h = jnp.maximum(pre, 0.0)
    elif activation == "softplus":
        h = jax.nn.softplus(pre)
    else:
        h = jnp.tanh(pre)
    return (h @ w2.T + b2) * scale_dx


if __name__ == "__main__":
    n_x, n_u, n_feat = 4, 2, 32
    scale_dx = 0.5

    key = jax.random.PRNGKey(0)
    kx, ku, kp = jax.random.split(key, 3)

    # main check: small batch, non-trivial weights
    batch = 8
    in_x = jax.random.normal(kx, (batch, n_x), jnp.float32)
    in_u = jax.random.normal(ku, (batch, n_u), jnp.float32)
    params = init_params(kp, n_x, n_u, n_feat, init_small=False)

    dx = neural_state_space_forward(in_x, in_u, params, scale_dx)
    dx = jax.block_until_ready(dx)
    dx_ref = _reference(in_x, in_u, params, scale_dx)
    assert dx.shape == (batch, n_x)
    assert jnp.allclose(dx, dx_ref, atol=1e-5, rtol=1e-5)

    # second check: init_small (module default) + batch not a multiple of 8
    batch2 = 3
    in_x2 = jax.random.normal(kx, (batch2, n_x), jnp.float32)
    in_u2 = jax.random.normal(ku, (batch2, n_u), jnp.float32)
    params_small = init_params(kp, n_x, n_u, n_feat, init_small=True)
    dx2 = jax.block_until_ready(
        neural_state_space_forward(in_x2, in_u2, params_small, scale_dx))
    dx2_ref = _reference(in_x2, in_u2, params_small, scale_dx)
    assert dx2.shape == (batch2, n_x)
    assert jnp.allclose(dx2, dx2_ref, atol=1e-6, rtol=1e-5)

    print("KERNEL_OK")
</pallas_src>

<mosaic_0001>
module attributes {stable_mosaic.version = 11 : i64} {
  func.func @_nss_kernel(%arg0: i32, %arg1: memref<4x128xf32, #tpu.memory_space<vmem>>, %arg2: memref<2x128xf32, #tpu.memory_space<vmem>>, %arg3: memref<32x4xf32, #tpu.memory_space<vmem>>, %arg4: memref<32x2xf32, #tpu.memory_space<vmem>>, %arg5: memref<32x1xf32, #tpu.memory_space<vmem>>, %arg6: memref<4x32xf32, #tpu.memory_space<vmem>>, %arg7: memref<4x1xf32, #tpu.memory_space<vmem>>, %arg8: memref<4x128xf32, #tpu.memory_space<vmem>>) attributes {dimension_semantics = [#tpu.dimension_semantics<parallel>], iteration_bounds = array<i64: 1>, scalar_prefetch = 0 : i64, scratch_operands = 0 : i64, tpu.core_type = #tpu.core_type<tc>, window_params = [{transform_indices = @transform_0, window_bounds = array<i64: 4, 128>}, {transform_indices = @transform_1, window_bounds = array<i64: 2, 128>}, {pipeline_mode = #tpu.pipeline_mode<synchronous>, transform_indices = @transform_2, window_bounds = array<i64: 32, 4>}, {pipeline_mode = #tpu.pipeline_mode<synchronous>, transform_indices = @transform_3, window_bounds = array<i64: 32, 2>}, {pipeline_mode = #tpu.pipeline_mode<synchronous>, transform_indices = @transform_4, window_bounds = array<i64: 32, 1>}, {pipeline_mode = #tpu.pipeline_mode<synchronous>, transform_indices = @transform_5, window_bounds = array<i64: 4, 32>}, {pipeline_mode = #tpu.pipeline_mode<synchronous>, transform_indices = @transform_6, window_bounds = array<i64: 4, 1>}, {transform_indices = @transform_7, window_bounds = array<i64: 4, 128>}]} {
    %c0 = arith.constant 0 : index
    %c0_0 = arith.constant 0 : index
    %0 = vector.load %arg3[%c0, %c0_0] : memref<32x4xf32, #tpu.memory_space<vmem>>, vector<32x4xf32>
    %c0_1 = arith.constant 0 : index
    %c0_2 = arith.constant 0 : index
    %1 = vector.load %arg1[%c0_1, %c0_2] : memref<4x128xf32, #tpu.memory_space<vmem>>, vector<4x128xf32>
    %cst = arith.constant dense<0.000000e+00> : vector<32x128xf32>
    %2 = tpu.matmul %0, %1, %cst {dimension_numbers = #tpu.dot_dimension_numbers<[1], [0], [0], [1], [0, 0, 1, 1], [], []>} : vector<32x4xf32>, vector<4x128xf32>, vector<32x128xf32> -> vector<32x128xf32>
    %c0_3 = arith.constant 0 : index
    %c0_4 = arith.constant 0 : index
    %3 = vector.load %arg4[%c0_3, %c0_4] : memref<32x2xf32, #tpu.memory_space<vmem>>, vector<32x2xf32>
    %c0_5 = arith.constant 0 : index
    %c0_6 = arith.constant 0 : index
    %4 = vector.load %arg2[%c0_5, %c0_6] : memref<2x128xf32, #tpu.memory_space<vmem>>, vector<2x128xf32>
    %cst_7 = arith.constant dense<0.000000e+00> : vector<32x128xf32>
    %5 = tpu.matmul %3, %4, %cst_7 {dimension_numbers = #tpu.dot_dimension_numbers<[1], [0], [0], [1], [0, 0, 1, 1], [], []>} : vector<32x2xf32>, vector<2x128xf32>, vector<32x128xf32> -> vector<32x128xf32>
    %6 = arith.addf %2, %5 : vector<32x128xf32>
    %c0_8 = arith.constant 0 : index
    %c0_9 = arith.constant 0 : index
    %7 = vector.load %arg5[%c0_8, %c0_9] : memref<32x1xf32, #tpu.memory_space<vmem>>, vector<32x1xf32>
    %8 = vector.broadcast %7 : vector<32x1xf32> to vector<32x128xf32>
    %9 = arith.addf %6, %8 : vector<32x128xf32>
    %cst_10 = arith.constant 0.000000e+00 : f32
    %10 = vector.broadcast %cst_10 : f32 to vector<32x128xf32>
    %11 = arith.maximumf %9, %10 : vector<32x128xf32>
    %c0_11 = arith.constant 0 : index
    %c0_12 = arith.constant 0 : index
    %12 = vector.load %arg6[%c0_11, %c0_12] : memref<4x32xf32, #tpu.memory_space<vmem>>, vector<4x32xf32>
    %cst_13 = arith.constant dense<0.000000e+00> : vector<4x128xf32>
    %13 = tpu.matmul %12, %11, %cst_13 {dimension_numbers = #tpu.dot_dimension_numbers<[1], [0], [0], [1], [0, 0, 1, 1], [], []>} : vector<4x32xf32>, vector<32x128xf32>, vector<4x128xf32> -> vector<4x128xf32>
    %c0_14 = arith.constant 0 : index
    %c0_15 = arith.constant 0 : index
    %14 = vector.load %arg7[%c0_14, %c0_15] : memref<4x1xf32, #tpu.memory_space<vmem>>, vector<4x1xf32>
    %15 = vector.broadcast %14 : vector<4x1xf32> to vector<4x128xf32>
    %16 = arith.addf %13, %15 : vector<4x128xf32>
    %c0_16 = arith.constant 0 : index
    %c0_17 = arith.constant 0 : index
    %17 = vector.load %arg8[%c0_16, %c0_17] : memref<4x128xf32, #tpu.memory_space<vmem>>, vector<4x128xf32>
    tpu.vector_store %arg8[%c0_16, %c0_17], %16 {strides = array<i32>} : memref<4x128xf32, #tpu.memory_space<vmem>>, vector<4x128xf32>,
    return
  }
  func.func @transform_0(%arg0: i32) -> (i32, i32) {
    %c0_i32 = arith.constant 0 : i32
    %c0_i32_0 = arith.constant 0 : i32
    return %c0_i32, %arg0 : i32, i32
  }
  func.func @transform_1(%arg0: i32) -> (i32, i32) {
    %c0_i32 = arith.constant 0 : i32
    %c0_i32_0 = arith.constant 0 : i32
    return %c0_i32, %arg0 : i32, i32
  }
  func.func @transform_2(%arg0: i32) -> (i32, i32) {
    %c0_i32 = arith.constant 0 : i32
    %c0_i32_0 = arith.constant 0 : i32
    %c0_i32_1 = arith.constant 0 : i32
    return %c0_i32, %c0_i32_0 : i32, i32
  }
  func.func @transform_3(%arg0: i32) -> (i32, i32) {
    %c0_i32 = arith.constant 0 : i32
    %c0_i32_0 = arith.constant 0 : i32
    %c0_i32_1 = arith.constant 0 : i32
    return %c0_i32, %c0_i32_0 : i32, i32
  }
  func.func @transform_4(%arg0: i32) -> (i32, i32) {
    %c0_i32 = arith.constant 0 : i32
    %c0_i32_0 = arith.constant 0 : i32
    %c0_i32_1 = arith.constant 0 : i32
    return %c0_i32, %c0_i32_0 : i32, i32
  }
  func.func @transform_5(%arg0: i32) -> (i32, i32) {
    %c0_i32 = arith.constant 0 : i32
    %c0_i32_0 = arith.constant 0 : i32
    %c0_i32_1 = arith.constant 0 : i32
    return %c0_i32, %c0_i32_0 : i32, i32
  }
  func.func @transform_6(%arg0: i32) -> (i32, i32) {
    %c0_i32 = arith.constant 0 : i32
    %c0_i32_0 = arith.constant 0 : i32
    %c0_i32_1 = arith.constant 0 : i32
    return %c0_i32, %c0_i32_0 : i32, i32
  }
  func.func @transform_7(%arg0: i32) -> (i32, i32) {
    %c0_i32 = arith.constant 0 : i32
    %c0_i32_0 = arith.constant 0 : i32
    return %c0_i32, %arg0 : i32, i32
  }
}

</mosaic_0001>

<llo_original>
// kernel: tpu_custom_call.1
$region0: #{tpu_custom_call.1}
  #allocation0 [shape = 'u32[]', space=smem, size = 0x4, offset = 0x4, fixed_abs, tag = 'smem constant byte address 0x4 - core index']
  #allocation1 [shape = 'u32[144,128]{1,0:T(1,128)}', space=vmem, size = 0x12000, scoped, tag = 'internal scratch']
  %s0 = inlined_call_operand.vmem [shape: f32[4,128], index: 0, kind: input, shape index: {}]
  %s1 = inlined_call_operand.vmem [shape: f32[2,128], index: 1, kind: input, shape index: {}]
  %s2 = inlined_call_operand.vmem [shape: f32[32,4], index: 2, kind: input, shape index: {}]
  %s3 = inlined_call_operand.vmem [shape: f32[32,2], index: 3, kind: input, shape index: {}]
  %s4 = inlined_call_operand.vmem [shape: f32[32,1], index: 4, kind: input, shape index: {}]
  %s5 = inlined_call_operand.vmem [shape: f32[4,32], index: 5, kind: input, shape index: {}]
  %s6 = inlined_call_operand.vmem [shape: f32[4,1], index: 6, kind: input, shape index: {}]
  %s7 = inlined_call_operand.hbm [shape: f32[4,128], index: 7, kind: output, shape index: {}]
  %s8 = sld [smem:[#allocation0]]
  $region38: #{tpu_custom_call.1} parent=0
    _
  %s10 = ssub.s32 1, %s8
  %s11 = scalar_select 0, %s10, %s8
  $region1: #{tpu_custom_call.1} parent=0
    #allocation2 [shape = 'u8[2048]{0}', space=vmem, size = 0x800, scoped, tag = 'output window, operand 0, single buffered']
    #allocation3 [shape = 's32[1]{0}', space=sflag, size = 0x4, scoped, tag = 'scoped memory for tpu_custom_call.1']
    %12 = vsyncpa [#allocation3], 0
    // Predicated region
    $region2: #{tpu_custom_call.1} parent=1 // pred_check
      _
    $region3: #{tpu_custom_call.1} parent=1 // pred_check_branch
      %14 = sbr.rel (0) target = $region5
    $region4: #{tpu_custom_call.1} parent=1 // pred_region
      _
    $region5: #{tpu_custom_call.1} parent=1 // pred_fallthru
      _
    // Predicated region
    $region6: #{tpu_custom_call.1} parent=1 // pred_check
      _
    $region7: #{tpu_custom_call.1} parent=1 // pred_check_branch
      %16 = sbr.rel (0) target = $region9
    $region8: #{tpu_custom_call.1} parent=1 // pred_region
      _
    $region9: #{tpu_custom_call.1} parent=1 // pred_fallthru
      _
    // Predicated region
    $region10: #{tpu_custom_call.1} parent=1 // pred_check
      _
    $region11: #{tpu_custom_call.1} parent=1 // pred_check_branch
      %18 = sbr.rel (0) target = $region13
    $region12: #{tpu_custom_call.1} parent=1 // pred_region
      _
    $region13: #{tpu_custom_call.1} parent=1 // pred_fallthru
      _
    // Predicated region
    $region14: #{tpu_custom_call.1} parent=1 // pred_check
      _
    $region15: #{tpu_custom_call.1} parent=1 // pred_check_branch
      %20 = sbr.rel (0) target = $region17
    $region16: #{tpu_custom_call.1} parent=1 // pred_region
      _
    $region17: #{tpu_custom_call.1} parent=1 // pred_fallthru
      _
    // Predicated region
    $region18: #{tpu_custom_call.1} parent=1 // pred_check
      _
    $region19: #{tpu_custom_call.1} parent=1 // pred_check_branch
      %22 = sbr.rel (0) target = $region21
    $region20: #{tpu_custom_call.1} parent=1 // pred_region
      _
    $region21: #{tpu_custom_call.1} parent=1 // pred_fallthru
      _
    // Predicated region
    $region22: #{tpu_custom_call.1} parent=1 // pred_check
      _
    $region23: #{tpu_custom_call.1} parent=1 // pred_check_branch
      %24 = sbr.rel (0) target = $region25
    $region24: #{tpu_custom_call.1} parent=1 // pred_region
      _
    $region25: #{tpu_custom_call.1} parent=1 // pred_fallthru
      _
    // Predicated region
    $region26: #{tpu_custom_call.1} parent=1 // pred_check
      _
    $region27: #{tpu_custom_call.1} parent=1 // pred_check_branch
      %26 = sbr.rel (0) target = $region29
    $region28: #{tpu_custom_call.1} parent=1 // pred_region
      _
    $region29: #{tpu_custom_call.1} parent=1 // pred_fallthru
      _
    %v27 = vld [vmem:[%s2] sm:$0xff]
    %v28 = vld [vmem:[%s2 + $0x8] sm:$0xff]
    %v29 = vld [vmem:[%s2 + $0x10] sm:$0xff]
    %v30 = vld [vmem:[%s2 + $0x18] sm:$0xff]
    %v31 = vld [vmem:[%s0] sm:$0xf]
    %v32 = vld [vmem:[%s3] sm:$0xff]
    %v33 = vld [vmem:[%s3 + $0x8] sm:$0xff]
    %v34 = vld [vmem:[%s3 + $0x10] sm:$0xff]
    %v35 = vld [vmem:[%s3 + $0x18] sm:$0xff]
    %v36 = vld [vmem:[%s1] sm:$0x3]
    %vm37 = vcmask 15360
    %v39 = vsel %vm37, %v32, 0
    %v42 = vsel %vm37, %v33, 0
    %v45 = vsel %vm37, %v34, 0
    %v48 = vsel %vm37, %v35, 0
    %vm50 = vcmask 1041408
    %v52 = vsel %vm50, %v36, 0
    %54 = vmatprep.subr.mxu0 0.0
    %55 = vmatpush1.msra.mxu0 %v52
    %56 = vmatprep.subr.mxu0 0.0
    %57 = vmatpush1.msra.mxu0 0.0
    %58 = vmatprep.subr.mxu0 0.0
    %59 = vmatpush1.msra.mxu0 0.0
    %60 = vmatprep.subr.mxu0 0.0
    %61 = vmatpush1.msra.mxu0 0.0
    %62 = vmatprep.subr.mxu0 0.0
    %63 = vmatpush1.msra.mxu0 0.0
    %64 = vmatprep.subr.mxu0 0.0
    %65 = vmatpush1.msra.mxu0 0.0
    %66 = vmatprep.subr.mxu0 0.0
    %67 = vmatpush1.msra.mxu0 0.0
    %68 = vmatprep.subr.mxu0 0.0
    %69 = vmatpush1.msra.mxu0 0.0
    %70 = vmatprep.subr.mxu0 0.0
    %71 = vmatpush1.msra.mxu0 0.0
    %72 = vmatprep.subr.mxu0 0.0
    %73 = vmatpush1.msra.mxu0 0.0
    %74 = vmatprep.subr.mxu0 0.0
    %75 = vmatpush1.msra.mxu0 0.0
    %76 = vmatprep.subr.mxu0 0.0
    %77 = vmatpush1.msra.mxu0 0.0
    %78 = vmatprep.subr.mxu0 0.0
    %79 = vmatpush1.msra.mxu0 0.0
    %80 = vmatprep.subr.mxu0 0.0
    %81 = vmatpush1.msra.mxu0 0.0
    %82 = vmatprep.subr.mxu0 0.0
    %83 = vmatpush1.msra.mxu0 0.0
    %84 = vmatprep.subr.mxu0 0.0
    %85 = vmatpush1.msra.mxu0 0.0
    %86 = vmatprep.subr.mxu0 0.0
    %87 = vmatpush1.msra.mxu0 0.0
    %88 = vmatprep.subr.mxu0 0.0
    %89 = vmatpush1.msra.mxu0 0.0
    %90 = vmatprep.subr.mxu0 0.0
    %91 = vmatpush1.msra.mxu0 0.0
    %92 = vmatprep.subr.mxu0 0.0
    %93 = vmatpush1.msra.mxu0 0.0
    %94 = vmatprep.subr.mxu0 0.0
    %95 = vmatpush1.msra.mxu0 0.0
    %96 = vmatprep.subr.mxu0 0.0
    %97 = vmatpush1.msra.mxu0 0.0
    %98 = vmatprep.subr.mxu0 0.0
    %99 = vmatpush1.msra.mxu0 0.0
    %100 = vmatprep.subr.mxu0 0.0
    %101 = vmatpush1.msra.mxu0 0.0
    %102 = vmatprep.subr.mxu0 0.0
    %103 = vmatpush1.msra.mxu0 0.0
    %104 = vmatprep.subr.mxu0 0.0
    %105 = vmatpush1.msra.mxu0 0.0
    %106 = vmatprep.subr.mxu0 0.0
    %107 = vmatpush1.msra.mxu0 0.0
    %108 = vmatprep.subr.mxu0 0.0
    %109 = vmatpush1.msra.mxu0 0.0
    %110 = vmatprep.subr.mxu0 0.0
    %111 = vmatpush1.msra.mxu0 0.0
    %112 = vmatprep.subr.mxu0 0.0
    %113 = vmatpush1.msra.mxu0 0.0
    %114 = vmatprep.subr.mxu0 0.0
    %115 = vmatpush1.msra.mxu0 0.0
    %116 = vmatprep.subr.mxu0 0.0
    %117 = vmatpush1.msra.mxu0 0.0
    %118 = vmatprep.mubr.f32.mxu0 0.0
    %119 = vmatmul.mubr.f32.gmra.mrb[0].mxu0 %v39
    %v120 = vpop.f32.mrb[0].mxu0
    %v121 = vadd.f32 0.0, %v120
    %v122 = vpop.f32.mrb[0].mxu0
    %123 = vmatprep.mubr.f32.mxu0 0.0
    %124 = vmatmul.mubr.f32.gmra.mrb[0].mxu0 %v42
    %v125 = vpop.f32.mrb[0].mxu0
    %v126 = vadd.f32 0.0, %v125
    %v127 = vpop.f32.mrb[0].mxu0
    %128 = vmatprep.mubr.f32.mxu0 0.0
    %129 = vmatmul.mubr.f32.gmra.mrb[0].mxu0 %v45
    %v130 = vpop.f32.mrb[0].mxu0
    %v131 = vadd.f32 0.0, %v130
    %v132 = vpop.f32.mrb[0].mxu0
    %133 = vmatprep.mubr.f32.mxu0 0.0
    %134 = vmatmul.mubr.f32.gmra.mrb[0].mxu0 %v48
    %v135 = vpop.f32.mrb[0].mxu0
    %v136 = vadd.f32 0.0, %v135
    %v137 = vpop.f32.mrb[0].mxu0
    %138 = vdwg.mxu0
    %vm139 = vcmask 31744
    %v141 = vsel %vm139, %v27, 0
    %v144 = vsel %vm139, %v28, 0
    %v147 = vsel %vm139, %v29, 0
    %v150 = vsel %vm139, %v30, 0
    %vm152 = vcmask 1043456
    %v154 = vsel %vm152, %v31, 0
    %156 = vmatprep.subr.mxu0 0.0
    %157 = vmatpush1.msra.mxu0 %v154
    %158 = vmatprep.subr.mxu0 0.0
    %159 = vmatpush1.msra.mxu0 0.0
    %160 = vmatprep.subr.mxu0 0.0
    %161 = vmatpush1.msra.mxu0 0.0
    %162 = vmatprep.subr.mxu0 0.0
    %163 = vmatpush1.msra.mxu0 0.0
    %164 = vmatprep.subr.mxu0 0.0
    %165 = vmatpush1.msra.mxu0 0.0
    %166 = vmatprep.subr.mxu0 0.0
    %167 = vmatpush1.msra.mxu0 0.0
    %168 = vmatprep.subr.mxu0 0.0
    %169 = vmatpush1.msra.mxu0 0.0
    %170 = vmatprep.subr.mxu0 0.0
    %171 = vmatpush1.msra.mxu0 0.0
    %172 = vmatprep.subr.mxu0 0.0
    %173 = vmatpush1.msra.mxu0 0.0
    %174 = vmatprep.subr.mxu0 0.0
    %175 = vmatpush1.msra.mxu0 0.0
    %176 = vmatprep.subr.mxu0 0.0
    %177 = vmatpush1.msra.mxu0 0.0
    %178 = vmatprep.subr.mxu0 0.0
    %179 = vmatpush1.msra.mxu0 0.0
    %180 = vmatprep.subr.mxu0 0.0
    %181 = vmatpush1.msra.mxu0 0.0
    %182 = vmatprep.subr.mxu0 0.0
    %183 = vmatpush1.msra.mxu0 0.0
    %184 = vmatprep.subr.mxu0 0.0
    %185 = vmatpush1.msra.mxu0 0.0
    %186 = vmatprep.subr.mxu0 0.0
    %187 = vmatpush1.msra.mxu0 0.0
    %188 = vmatprep.subr.mxu0 0.0
    %189 = vmatpush1.msra.mxu0 0.0
    %190 = vmatprep.subr.mxu0 0.0
    %191 = vmatpush1.msra.mxu0 0.0
    %192 = vmatprep.subr.mxu0 0.0
    %193 = vmatpush1.msra.mxu0 0.0
    %194 = vmatprep.subr.mxu0 0.0
    %195 = vmatpush1.msra.mxu0 0.0
    %196 = vmatprep.subr.mxu0 0.0
    %197 = vmatpush1.msra.mxu0 0.0
    %198 = vmatprep.subr.mxu0 0.0
    %199 = vmatpush1.msra.mxu0 0.0
    %200 = vmatprep.subr.mxu0 0.0
    %201 = vmatpush1.msra.mxu0 0.0
    %202 = vmatprep.subr.mxu0 0.0
    %203 = vmatpush1.msra.mxu0 0.0
    %204 = vmatprep.subr.mxu0 0.0
    %205 = vmatpush1.msra.mxu0 0.0
    %206 = vmatprep.subr.mxu0 0.0
    %207 = vmatpush1.msra.mxu0 0.0
    %208 = vmatprep.subr.mxu0 0.0
    %209 = vmatpush1.msra.mxu0 0.0
    %210 = vmatprep.subr.mxu0 0.0
    %211 = vmatpush1.msra.mxu0 0.0
    %212 = vmatprep.subr.mxu0 0.0
    %213 = vmatpush1.msra.mxu0 0.0
    %214 = vmatprep.subr.mxu0 0.0
    %215 = vmatpush1.msra.mxu0 0.0
    %216 = vmatprep.subr.mxu0 0.0
    %217 = vmatpush1.msra.mxu0 0.0
    %218 = vmatprep.subr.mxu0 0.0
    %219 = vmatpush1.msra.mxu0 0.0
    %220 = vmatprep.mubr.f32.mxu0 0.0
    %221 = vmatmul.mubr.f32.gmra.mrb[0].mxu0 %v141
    %v222 = vpop.f32.mrb[0].mxu0
    %v223 = vadd.f32 %v121, %v222
    %v224 = vpop.f32.mrb[0].mxu0
    %225 = vmatprep.mubr.f32.mxu0 0.0
    %226 = vmatmul.mubr.f32.gmra.mrb[0].mxu0 %v144
    %v227 = vpop.f32.mrb[0].mxu0
    %v228 = vadd.f32 %v126, %v227
    %v229 = vpop.f32.mrb[0].mxu0
    %230 = vmatprep.mubr.f32.mxu0 0.0
    %231 = vmatmul.mubr.f32.gmra.mrb[0].mxu0 %v147
    %v232 = vpop.f32.mrb[0].mxu0
    %v233 = vadd.f32 %v131, %v232
    %v234 = vpop.f32.mrb[0].mxu0
    %235 = vmatprep.mubr.f32.mxu0 0.0
    %236 = vmatmul.mubr.f32.gmra.mrb[0].mxu0 %v150
    %v237 = vpop.f32.mrb[0].mxu0
    %v238 = vadd.f32 %v136, %v237
    %v239 = vpop.f32.mrb[0].mxu0
    %240 = vdwg.mxu0
    %v241 = vld [vmem:[%s4] sm:$0xff]
    %v242 = vld [vmem:[%s4 + $0x8] sm:$0xff]
    %v243 = vld [vmem:[%s4 + $0x10] sm:$0xff]
    %v244 = vld [vmem:[%s4 + $0x18] sm:$0xff]
    %246 = vset.pattern.permute.xlu0 0
    %247 = vperm.xlu0 %246, %v241
    %v248 = vpop.permute.xlu0 %247
    %251 = vset.pattern.permute.xlu0 0
    %252 = vperm.xlu0 %251, %v242
    %v253 = vpop.permute.xlu0 %252
    %256 = vset.pattern.permute.xlu0 0
    %257 = vperm.xlu0 %256, %v243
    %v258 = vpop.permute.xlu0 %257
    %261 = vset.pattern.permute.xlu0 0
    %262 = vperm.xlu0 %261, %v244
    %v263 = vpop.permute.xlu0 %262
    %v265 = vadd.f32 %v223, %v248
    %v266 = vadd.f32 %v228, %v253
    %v267 = vadd.f32 %v233, %v258
    %v268 = vadd.f32 %v238, %v263
    %v269 = vmax.f32 %v265, 0.0
    %v270 = vmax.f32 %v266, 0.0
    %v271 = vmax.f32 %v267, 0.0
    %v272 = vmax.f32 %v268, 0.0
    %v273 = vld [vmem:[%s5] sm:$0xf]
    %v274 = vld [vmem:[%s6] sm:$0xf]
    %276 = vset.pattern.permute.xlu0 0
    %277 = vperm.xlu0 %276, %v274
    %v278 = vpop.permute.xlu0 %277
    %vm280 = vcmask 261120
    %v282 = vsel %vm280, %v273, 0
    %284 = vmatprep.subr.mxu0 0.0
    %285 = vmatpush1.msra.mxu0 %v269
    %286 = vmatprep.subr.mxu0 0.0
    %287 = vmatpush1.msra.mxu0 %v270
    %288 = vmatprep.subr.mxu0 0.0
    %289 = vmatpush1.msra.mxu0 %v271
    %290 = vmatprep.subr.mxu0 0.0
    %291 = vmatpush1.msra.mxu0 %v272
    %292 = vmatprep.subr.mxu0 0.0
    %293 = vmatpush1.msra.mxu0 0.0
    %294 = vmatprep.subr.mxu0 0.0
    %295 = vmatpush1.msra.mxu0 0.0
    %296 = vmatprep.subr.mxu0 0.0
    %297 = vmatpush1.msra.mxu0 0.0
    %298 = vmatprep.subr.mxu0 0.0
    %299 = vmatpush1.msra.mxu0 0.0
    %300 = vmatprep.subr.mxu0 0.0
    %301 = vmatpush1.msra.mxu0 0.0
    %302 = vmatprep.subr.mxu0 0.0
    %303 = vmatpush1.msra.mxu0 0.0
    %304 = vmatprep.subr.mxu0 0.0
    %305 = vmatpush1.msra.mxu0 0.0
    %306 = vmatprep.subr.mxu0 0.0
    %307 = vmatpush1.msra.mxu0 0.0
    %308 = vmatprep.subr.mxu0 0.0
    %309 = vmatpush1.msra.mxu0 0.0
    %310 = vmatprep.subr.mxu0 0.0
    %311 = vmatpush1.msra.mxu0 0.0
    %312 = vmatprep.subr.mxu0 0.0
    %313 = vmatpush1.msra.mxu0 0.0
    %314 = vmatprep.subr.mxu0 0.0
    %315 = vmatpush1.msra.mxu0 0.0
    %316 = vmatprep.subr.mxu0 0.0
    %317 = vmatpush1.msra.mxu0 0.0
    %318 = vmatprep.subr.mxu0 0.0
    %319 = vmatpush1.msra.mxu0 0.0
    %320 = vmatprep.subr.mxu0 0.0
    %321 = vmatpush1.msra.mxu0 0.0
    %322 = vmatprep.subr.mxu0 0.0
    %323 = vmatpush1.msra.mxu0 0.0
    %324 = vmatprep.subr.mxu0 0.0
    %325 = vmatpush1.msra.mxu0 0.0
    %326 = vmatprep.subr.mxu0 0.0
    %327 = vmatpush1.msra.mxu0 0.0
    %328 = vmatprep.subr.mxu0 0.0
    %329 = vmatpush1.msra.mxu0 0.0
    %330 = vmatprep.subr.mxu0 0.0
    %331 = vmatpush1.msra.mxu0 0.0
    %332 = vmatprep.subr.mxu0 0.0
    %333 = vmatpush1.msra.mxu0 0.0
    %334 = vmatprep.subr.mxu0 0.0
    %335 = vmatpush1.msra.mxu0 0.0
    %336 = vmatprep.subr.mxu0 0.0
    %337 = vmatpush1.msra.mxu0 0.0
    %338 = vmatprep.subr.mxu0 0.0
    %339 = vmatpush1.msra.mxu0 0.0
    %340 = vmatprep.subr.mxu0 0.0
    %341 = vmatpush1.msra.mxu0 0.0
    %342 = vmatprep.subr.mxu0 0.0
    %343 = vmatpush1.msra.mxu0 0.0
    %344 = vmatprep.subr.mxu0 0.0
    %345 = vmatpush1.msra.mxu0 0.0
    %346 = vmatprep.subr.mxu0 0.0
    %347 = vmatpush1.msra.mxu0 0.0
    %348 = vmatprep.mubr.f32.mxu0 0.0
    %349 = vmatmul.mubr.f32.gmra.mrb[0].mxu0 %v282
    %v350 = vpop.f32.mrb[0].mxu0
    %v351 = vadd.f32 %v278, %v350
    %v352 = vpop.f32.mrb[0].mxu0
    %353 = vdwg.mxu0
    %354 = vst [vmem:[#allocation2] sm:$0xf] %v351
    // Predicated region
    $region30: #{tpu_custom_call.1} parent=1 // pred_check
      _
    $region31: #{tpu_custom_call.1} parent=1 // pred_check_branch
      %356 = sbr.rel (0) target = $region33
    $region32: #{tpu_custom_call.1} parent=1 // pred_region
      %s358 = ssub.s32 64, 64
      %359 = vsyncadd [#allocation3], %s358
      %s361 = sshll.u32 [#allocation2], 4
      %s362 = int_to_ptr.vmem [resolvable:$true] %s361
      %364 = dma.vmem_to_hbm [thread:$0]  %s362, 64, %s7, [#allocation3]
    $region33: #{tpu_custom_call.1} parent=1 // pred_fallthru
      _
    // Predicated region
    $region34: #{tpu_custom_call.1} parent=1 // pred_check
      _
    $region35: #{tpu_custom_call.1} parent=1 // pred_check_branch
      %366 = sbr.rel (0) target = $region37
    $region36: #{tpu_custom_call.1} parent=1 // pred_region
      %367 = dma.done [#allocation3], 64
    $region37: #{tpu_custom_call.1} parent=1 // pred_fallthru
      _
    %368 = vsyncpa [#allocation3], 1

</llo_original>
